<compile_context>
chip_gen: v5e
topology: v5e:2x2
jax: 0.10.0
libtpu: 0.0.40
codegen_flags: <defaults>
</compile_context>

<pallas_src>
import math

import jax
import jax.numpy as jnp
from jax.experimental import pallas as pl
from jax.experimental.pallas import tpu as pltpu

_INV_SQRT2 = 1.0 / math.sqrt(2.0)


def _gelu_erf(h):
    # exact (erf-based) gelu, as in BERT's ACT2FN["gelu"]
    return 0.5 * h * (1.0 + jax.lax.erf(h * _INV_SQRT2))


def _kernel_fused(x_ref, w_ref, b_ref, o_ref):
    # Single contraction tile: x_ref (tm, Hp), w_ref (Hp, tn), b_ref (1, tn), o_ref (tm, tn)
    h = jnp.dot(x_ref[...], w_ref[...], preferred_element_type=jnp.float32)
    h = h + b_ref[...].astype(jnp.float32)
    o_ref[...] = _gelu_erf(h).astype(o_ref.dtype)


def _kernel_ktiled(x_ref, w_ref, b_ref, o_ref, acc_ref):
    # K-tiled: x_ref (tm, tk), w_ref (tk, tn), b_ref (1, tn), o_ref (tm, tn), acc_ref (tm, tn) f32
    k = pl.program_id(2)

    @pl.when(k == 0)
    def _():
        acc_ref[...] = jnp.zeros_like(acc_ref)

    acc_ref[...] += jnp.dot(x_ref[...], w_ref[...],
                            preferred_element_type=jnp.float32)

    @pl.when(k == pl.num_programs(2) - 1)
    def _():
        h = acc_ref[...] + b_ref[...].astype(jnp.float32)
        o_ref[...] = _gelu_erf(h).astype(o_ref.dtype)


def _round_up(a, b):
    return (a + b - 1) // b * b


def cross_intermediate(x, dense_w, dense_b, *, tm=256, tn=512, tk=512):
    """x: [..., H]; dense_w: [I, H] (torch nn.Linear layout, out x in); dense_b: [I]."""
    # TODO(synk): config.hidden_act is configurable in the module; only erf-gelu is implemented here.
    *lead, H = x.shape
    I = dense_w.shape[0]
    N = 1
    for d in lead:
        N *= d

    x2 = x.reshape(N, H)

    # Clamp tiles to the (padded) problem size; keep sublane/lane alignment.
    tm = max(8, min(tm, _round_up(N, 8)))
    tn = max(128, min(tn, _round_up(I, 128)))
    h_aligned = _round_up(H, 128)
    tk = max(128, min(tk, h_aligned))

    n_pad = _round_up(N, tm)
    i_pad = _round_up(I, tn)
    h_pad = _round_up(h_aligned, tk)  # multiple of both tk and 128

    if (n_pad, h_pad) != (N, H):
        x2 = jnp.pad(x2, ((0, n_pad - N), (0, h_pad - H)))

    # One-time layout transform to (H, I); keep parameter dtype (no f32 upcast).
    w_t = dense_w.T
    b = dense_b.reshape(1, I)
    if (h_pad, i_pad) != (H, I):
        w_t = jnp.pad(w_t, ((0, h_pad - H), (0, i_pad - I)))
    if i_pad != I:
        b = jnp.pad(b, ((0, 0), (0, i_pad - I)))

    k_tiles = h_pad // tk

    bytes_accessed = (
        x2.size * x2.dtype.itemsize
        + w_t.size * w_t.dtype.itemsize
        + b.size * b.dtype.itemsize
        + n_pad * i_pad * x.dtype.itemsize
    )
    cost = pl.CostEstimate(
        flops=2 * n_pad * h_pad * i_pad,
        transcendentals=n_pad * i_pad,
        bytes_accessed=int(bytes_accessed),
    )

    if k_tiles == 1:
        # Whole contraction fits in one tile: fully fused, no accumulator.
        out = pl.pallas_call(
            _kernel_fused,
            out_shape=jax.ShapeDtypeStruct((n_pad, i_pad), x.dtype),
            grid_spec=pltpu.PrefetchScalarGridSpec(
                num_scalar_prefetch=0,
                grid=(n_pad // tm, i_pad // tn),
                in_specs=[
                    pl.BlockSpec((tm, h_pad), lambda i, j: (i, 0)),  # activation rows
                    pl.BlockSpec((h_pad, tn), lambda i, j: (0, j)),  # dense weight^T tile
                    pl.BlockSpec((1, tn), lambda i, j: (0, j)),      # bias tile
                ],
                out_specs=pl.BlockSpec((tm, tn), lambda i, j: (i, j)),
            ),
            compiler_params=pltpu.CompilerParams(
                dimension_semantics=("parallel", "parallel")),
            cost_estimate=cost,
        )(x2, w_t, b)
    else:
        # K-tiled matmul with an f32 VMEM accumulator; bias + gelu fused in the
        # last K step. Reduction axis is last and "arbitrary".
        out = pl.pallas_call(
            _kernel_ktiled,
            out_shape=jax.ShapeDtypeStruct((n_pad, i_pad), x.dtype),
            grid_spec=pltpu.PrefetchScalarGridSpec(
                num_scalar_prefetch=0,
                grid=(n_pad // tm, i_pad // tn, k_tiles),
                in_specs=[
                    pl.BlockSpec((tm, tk), lambda i, j, k: (i, k)),  # activation tile
                    pl.BlockSpec((tk, tn), lambda i, j, k: (k, j)),  # dense weight^T tile
                    pl.BlockSpec((1, tn), lambda i, j, k: (0, j)),   # bias tile
                ],
                out_specs=pl.BlockSpec((tm, tn), lambda i, j, k: (i, j)),
                scratch_shapes=[pltpu.VMEM((tm, tn), jnp.float32)],
            ),
            compiler_params=pltpu.CompilerParams(
                dimension_semantics=("parallel", "parallel", "arbitrary")),
            cost_estimate=cost,
        )(x2, w_t, b)

    out = out[:N, :I]
    return out.reshape(*lead, I)


def _reference(x, dense_w, dense_b):
    h = jnp.einsum("...h,ih->...i",
                   x.astype(jnp.float32),
                   dense_w.astype(jnp.float32)) + dense_b.astype(jnp.float32)
    return 0.5 * h * (1.0 + jax.lax.erf(h / jnp.sqrt(2.0)))


if __name__ == "__main__":
    # Small shapes consistent with the module: batch=2, seq=8, hidden=32,
    # intermediate = 4 * hidden = 128.
    B, S, H, I = 2, 8, 32, 128
    key = jax.random.PRNGKey(0)
    k1, k2, k3 = jax.random.split(key, 3)

    x = jax.random.normal(k1, (B, S, H), dtype=jnp.float32)
    dense_w = 0.02 * jax.random.normal(k2, (I, H), dtype=jnp.float32)  # torch Linear (out, in)
    dense_b = 0.02 * jax.random.normal(k3, (I,), dtype=jnp.float32)

    out = cross_intermediate(x, dense_w, dense_b)
    out = jax.block_until_ready(out)

    ref = _reference(x, dense_w, dense_b)
    assert out.shape == (B, S, I)
    assert jnp.allclose(out, ref, atol=1e-4, rtol=1e-4), "mismatch vs reference"

    # Ragged-shape path (row count not a multiple of the tile, intermediate size
    # not a multiple of 128) to validate the padding/masking.
    B2, S2, H2, I2 = 2, 5, 32, 96
    xr = jax.random.normal(jax.random.PRNGKey(1), (B2, S2, H2), dtype=jnp.float32)
    wr = 0.02 * jax.random.normal(jax.random.PRNGKey(2), (I2, H2), dtype=jnp.float32)
    br = 0.02 * jax.random.normal(jax.random.PRNGKey(3), (I2,), dtype=jnp.float32)
    out_r = jax.block_until_ready(cross_intermediate(xr, wr, br))
    ref_r = _reference(xr, wr, br)
    assert out_r.shape == (B2, S2, I2)
    assert jnp.allclose(out_r, ref_r, atol=1e-4, rtol=1e-4), "ragged mismatch vs reference"

    # Exercise the K-tiled (accumulator) path: hidden larger than one tk tile.
    B3, S3, H3, I3 = 2, 8, 640, 256
    xk = jax.random.normal(jax.random.PRNGKey(4), (B3, S3, H3), dtype=jnp.float32)
    wk = 0.02 * jax.random.normal(jax.random.PRNGKey(5), (I3, H3), dtype=jnp.float32)
    bk = 0.02 * jax.random.normal(jax.random.PRNGKey(6), (I3,), dtype=jnp.float32)
    out_k = jax.block_until_ready(cross_intermediate(xk, wk, bk, tk=512))
    ref_k = _reference(xk, wk, bk)
    assert out_k.shape == (B3, S3, I3)
    assert jnp.allclose(out_k, ref_k, atol=1e-3, rtol=1e-4), "k-tiled mismatch vs reference"

    print("KERNEL_OK")
</pallas_src>

<mosaic_0001>
module attributes {stable_mosaic.version = 11 : i64} {
  func.func @_kernel_fused(%arg0: i32, %arg1: i32, %arg2: memref<16x128xf32, #tpu.memory_space<vmem>>, %arg3: memref<128x128xf32, #tpu.memory_space<vmem>>, %arg4: memref<1x128xf32, #tpu.memory_space<vmem>>, %arg5: memref<16x128xf32, #tpu.memory_space<vmem>>) attributes {dimension_semantics = [#tpu.dimension_semantics<parallel>, #tpu.dimension_semantics<parallel>], iteration_bounds = array<i64: 1, 1>, scalar_prefetch = 0 : i64, scratch_operands = 0 : i64, tpu.core_type = #tpu.core_type<tc>, window_params = [{transform_indices = @transform_0, window_bounds = array<i64: 16, 128>}, {transform_indices = @transform_1, window_bounds = array<i64: 128, 128>}, {transform_indices = @transform_2, window_bounds = array<i64: 1, 128>}, {transform_indices = @transform_3, window_bounds = array<i64: 16, 128>}]} {
    %c0 = arith.constant 0 : index
    %c0_0 = arith.constant 0 : index
    %0 = vector.load %arg2[%c0, %c0_0] : memref<16x128xf32, #tpu.memory_space<vmem>>, vector<16x128xf32>
    %c0_1 = arith.constant 0 : index
    %c0_2 = arith.constant 0 : index
    %1 = vector.load %arg3[%c0_1, %c0_2] : memref<128x128xf32, #tpu.memory_space<vmem>>, vector<128x128xf32>
    %cst = arith.constant dense<0.000000e+00> : vector<16x128xf32>
    %2 = tpu.matmul %0, %1, %cst {dimension_numbers = #tpu.dot_dimension_numbers<[1], [0], [0], [1], [0, 0, 1, 1], [], []>} : vector<16x128xf32>, vector<128x128xf32>, vector<16x128xf32> -> vector<16x128xf32>
    %c0_3 = arith.constant 0 : index
    %c0_4 = arith.constant 0 : index
    %3 = vector.load %arg4[%c0_3, %c0_4] : memref<1x128xf32, #tpu.memory_space<vmem>>, vector<1x128xf32>
    %4 = vector.broadcast %3 : vector<1x128xf32> to vector<16x128xf32>
    %5 = arith.addf %2, %4 : vector<16x128xf32>
    %cst_5 = arith.constant 5.000000e-01 : f32
    %6 = vector.broadcast %cst_5 : f32 to vector<16x128xf32>
    %7 = arith.mulf %6, %5 : vector<16x128xf32>
    %cst_6 = arith.constant 0.707106769 : f32
    %8 = vector.broadcast %cst_6 : f32 to vector<16x128xf32>
    %9 = arith.mulf %5, %8 : vector<16x128xf32>
    %10 = math.erf %9 : vector<16x128xf32>
    %cst_7 = arith.constant 1.000000e+00 : f32
    %11 = vector.broadcast %cst_7 : f32 to vector<16x128xf32>
    %12 = arith.addf %11, %10 : vector<16x128xf32>
    %13 = arith.mulf %7, %12 : vector<16x128xf32>
    %c0_8 = arith.constant 0 : index
    %c0_9 = arith.constant 0 : index
    %14 = vector.load %arg5[%c0_8, %c0_9] : memref<16x128xf32, #tpu.memory_space<vmem>>, vector<16x128xf32>
    tpu.vector_store %arg5[%c0_8, %c0_9], %13 {strides = array<i32>} : memref<16x128xf32, #tpu.memory_space<vmem>>, vector<16x128xf32>,
    return
  }
  func.func @transform_0(%arg0: i32, %arg1: i32) -> (i32, i32) {
    %c0_i32 = arith.constant 0 : i32
    %c0_i32_0 = arith.constant 0 : i32
    return %arg0, %c0_i32 : i32, i32
  }
  func.func @transform_1(%arg0: i32, %arg1: i32) -> (i32, i32) {
    %c0_i32 = arith.constant 0 : i32
    %c0_i32_0 = arith.constant 0 : i32
    return %c0_i32, %arg1 : i32, i32
  }
  func.func @transform_2(%arg0: i32, %arg1: i32) -> (i32, i32) {
    %c0_i32 = arith.constant 0 : i32
    %c0_i32_0 = arith.constant 0 : i32
    return %c0_i32, %arg1 : i32, i32
  }
  func.func @transform_3(%arg0: i32, %arg1: i32) -> (i32, i32) {
    %c0_i32 = arith.constant 0 : i32
    return %arg0, %arg1 : i32, i32
  }
}

</mosaic_0001>

<llo_original>
// kernel: tpu_custom_call.1
$region0: #{tpu_custom_call.1}
  #allocation0 [shape = 'u32[]', space=smem, size = 0x4, offset = 0x4, fixed_abs, tag = 'smem constant byte address 0x4 - core index']
  #allocation1 [shape = 'u32[72,128]{1,0:T(1,128)}', space=vmem, size = 0x9000, scoped, tag = 'internal scratch']
  %s0 = inlined_call_operand.hbm [shape: f32[16,128], index: 0, kind: input, shape index: {}]
  %s1 = inlined_call_operand.hbm [shape: f32[128,128], index: 1, kind: input, shape index: {}]
  %s2 = inlined_call_operand.vmem [shape: f32[1,128], index: 2, kind: input, shape index: {}]
  %s3 = inlined_call_operand.hbm [shape: f32[16,128], index: 3, kind: output, shape index: {}]
  %s4 = sld [smem:[#allocation0]]
  $region30: #{tpu_custom_call.1} parent=0
    _
  %s6 = ssub.s32 1, %s4
  %s7 = scalar_select 0, %s6, %s4
  $region1: #{tpu_custom_call.1} parent=0
    #allocation2 [shape = 'u8[8192]{0}', space=vmem, size = 0x2000, scoped, tag = 'input window, operand 0, single buffered']
    #allocation3 [shape = 's32[1]{0}', space=sflag, size = 0x4, scoped, tag = 'scoped memory for tpu_custom_call.1']
    #allocation4 [shape = 's32[1]{0}', space=sflag, size = 0x4, scoped, tag = 'scoped memory for tpu_custom_call.1']
    #allocation5 [shape = 'u8[65536]{0}', space=vmem, size = 0x10000, scoped, tag = 'input window, operand 1, single buffered']
    #allocation6 [shape = 's32[1]{0}', space=sflag, size = 0x4, scoped, tag = 'scoped memory for tpu_custom_call.1']
    #allocation7 [shape = 'u8[8192]{0}', space=vmem, size = 0x2000, scoped, tag = 'output window, operand 0, single buffered']
    %8 = vsyncpa [#allocation3], 0
    %9 = vsyncpa [#allocation6], 0
    %10 = vsyncpa [#allocation4], 0
    // Predicated region
    $region2: #{tpu_custom_call.1} parent=1 // pred_check
      _
    $region3: #{tpu_custom_call.1} parent=1 // pred_check_branch
      %12 = sbr.rel (0) target = $region5
    $region4: #{tpu_custom_call.1} parent=1 // pred_region
      %14 = vsyncadd [#allocation3], 0
      %s15 = sshll.u32 %s0, 4
      %s16 = int_to_ptr.hbm [resolvable:$true] %s15
      %s17 = sshll.u32 [#allocation2], 4
      %s18 = int_to_ptr.vmem [resolvable:$true] %s17
      %23 = dma.hbm_to_vmem [thread:$0]  %s16, 256, %s18, [#allocation3], 128, 128, 8
    $region5: #{tpu_custom_call.1} parent=1 // pred_fallthru
      _
    // Predicated region
    $region6: #{tpu_custom_call.1} parent=1 // pred_check
      _
    $region7: #{tpu_custom_call.1} parent=1 // pred_check_branch
      %25 = sbr.rel (0) target = $region9
    $region8: #{tpu_custom_call.1} parent=1 // pred_region
      %27 = vsyncadd [#allocation6], 0
      %s28 = sshll.u32 %s1, 4
      %s29 = int_to_ptr.hbm [resolvable:$true] %s28
      %s30 = sshll.u32 [#allocation5], 4
      %s31 = int_to_ptr.vmem [resolvable:$true] %s30
      %36 = dma.hbm_to_vmem [thread:$0]  %s29, 2048, %s31, [#allocation6], 128, 128, 8
    $region9: #{tpu_custom_call.1} parent=1 // pred_fallthru
      _
    // Predicated region
    $region10: #{tpu_custom_call.1} parent=1 // pred_check
      _
    $region11: #{tpu_custom_call.1} parent=1 // pred_check_branch
      %38 = sbr.rel (0) target = $region13
    $region12: #{tpu_custom_call.1} parent=1 // pred_region
      _
    $region13: #{tpu_custom_call.1} parent=1 // pred_fallthru
      _
    // Predicated region
    $region14: #{tpu_custom_call.1} parent=1 // pred_check
      _
    $region15: #{tpu_custom_call.1} parent=1 // pred_check_branch
      %40 = sbr.rel (0) target = $region17
    $region16: #{tpu_custom_call.1} parent=1 // pred_region
      %42 = dma.done [#allocation3], 256
    $region17: #{tpu_custom_call.1} parent=1 // pred_fallthru
      _
    // Predicated region
    $region18: #{tpu_custom_call.1} parent=1 // pred_check
      _
    $region19: #{tpu_custom_call.1} parent=1 // pred_check_branch
      %44 = sbr.rel (0) target = $region21
    $region20: #{tpu_custom_call.1} parent=1 // pred_region
      %46 = dma.done [#allocation6], 2048
    $region21: #{tpu_custom_call.1} parent=1 // pred_fallthru
      _
    %v47 = vld [vmem:[#allocation2] sm:$0xff]
    %v48 = vld [vmem:[#allocation2 + $0x8] sm:$0xff]
    %v49 = vld [vmem:[#allocation5] sm:$0xff]
    %v50 = vld [vmem:[#allocation5 + $0x8] sm:$0xff]
    %v51 = vld [vmem:[#allocation5 + $0x10] sm:$0xff]
    %v52 = vld [vmem:[#allocation5 + $0x18] sm:$0xff]
    %v53 = vld [vmem:[#allocation5 + $0x20] sm:$0xff]
    %v54 = vld [vmem:[#allocation5 + $0x28] sm:$0xff]
    %v55 = vld [vmem:[#allocation5 + $0x30] sm:$0xff]
    %v56 = vld [vmem:[#allocation5 + $0x38] sm:$0xff]
    %v57 = vld [vmem:[#allocation5 + $0x40] sm:$0xff]
    %v58 = vld [vmem:[#allocation5 + $0x48] sm:$0xff]
    %v59 = vld [vmem:[#allocation5 + $0x50] sm:$0xff]
    %v60 = vld [vmem:[#allocation5 + $0x58] sm:$0xff]
    %v61 = vld [vmem:[#allocation5 + $0x60] sm:$0xff]
    %v62 = vld [vmem:[#allocation5 + $0x68] sm:$0xff]
    %v63 = vld [vmem:[#allocation5 + $0x70] sm:$0xff]
    %v64 = vld [vmem:[#allocation5 + $0x78] sm:$0xff]
    %v65 = vld [vmem:[%s2] sm:$0x1]
    %v67 = vperm.slane %v65, 0
    %69 = vmatpush.msra.mxu0 %v64
    %70 = vmatpush.msra.mxu0 %v63
    %71 = vmatpush.msra.mxu0 %v62
    %72 = vmatpush.msra.mxu0 %v61
    %73 = vmatpush.msra.mxu0 %v60
    %74 = vmatpush.msra.mxu0 %v59
    %75 = vmatpush.msra.mxu0 %v58
    %76 = vmatpush.msra.mxu0 %v57
    %77 = vmatpush.msra.mxu0 %v56
    %78 = vmatpush.msra.mxu0 %v55
    %79 = vmatpush.msra.mxu0 %v54
    %80 = vmatpush.msra.mxu0 %v53
    %81 = vmatpush.msra.mxu0 %v52
    %82 = vmatpush.msra.mxu0 %v51
    %83 = vmatpush.msra.mxu0 %v50
    %84 = vmatpush.msra.mxu0 %v49
    %85 = vmatmul.f32.gmra.mxu0 %v47
    %v86 = vpop.f32.mrf.mxu0
    %v87 = vadd.f32 %v67, %v86
    %88 = vmatmul.f32.gmra.mxu0 %v48
    %v89 = vpop.f32.mrf.mxu0
    %v90 = vadd.f32 %v67, %v89
    %91 = vdwg.mxu0
    %v92 = vmul.f32 %v87, 0.5
    %v93 = vmul.f32 %v90, 0.5
    %v94 = vmul.f32 %v87, 0.70710677
    %v95 = vmul.f32 %v90, 0.70710677
    %v96 = vmul.f32 %v94, %v94
    %v97 = vmin.f32 16.0, %v96
    %v98 = vmul.f32 %v97, 2.1237322e-06
    %v99 = vadd.f32 %v98, 0.00028619796
    %v100 = vmul.f32 %v97, %v99
    %v101 = vadd.f32 %v100, 0.0036580483
    %v102 = vmul.f32 %v97, %v101
    %v103 = vadd.f32 %v102, 0.05243302
    %v104 = vmul.f32 %v97, %v103
    %v105 = vadd.f32 %v104, 0.18741608
    %v106 = vmul.f32 %v97, %v105
    %v107 = vadd.f32 %v106, 1.1283791
    %v108 = vmul.f32 %v94, %v107
    %v109 = vmul.f32 %v97, 3.8918573e-05
    %v110 = vadd.f32 %v109, 0.001143296
    %v111 = vmul.f32 %v97, %v110
    %v112 = vadd.f32 %v111, 0.014752088
    %v113 = vmul.f32 %v97, %v112
    %v114 = vadd.f32 %v113, 0.112945676
    %v115 = vmul.f32 %v97, %v114
    %v116 = vadd.f32 %v115, 0.4994258
    %v117 = vmul.f32 %v97, %v116
    %v118 = vadd.f32 %v117, 1.0
    %v119 = vrcp.pop %v118
    %v120 = vmul.f32 %v118, %v119
    %v121 = vsub.f32 1.0, %v120
    %v122 = vmul.f32 %v119, %v121
    %v123 = vadd.f32 %v119, %v122
    %vm124 = vweird.f32 %v118
    %vm125 = vweird.f32 %v119
    %vm126 = vmor %vm124, %vm125
    %v127 = vsel %vm126, %v119, %v123
    %v128 = vand.u32 2147483647, %v118
    %vm129 = vcmp.eq.f32.partialorder %v128, 8.507059e+37
    %v130 = vand.u32 %v118, 2147483648
    %v131 = vor.u32 1.1754944e-38, %v130
    %v132 = vsel %vm129, %v131, %v127
    %v133 = vmul.f32 %v108, %v132
    %v134 = vmin.f32 %v133, 1.0
    %v135 = vmax.f32 %v134, -1.0
    %v136 = vmul.f32 %v95, %v95
    %v137 = vmin.f32 16.0, %v136
    %v138 = vmul.f32 %v137, 2.1237322e-06
    %v139 = vadd.f32 %v138, 0.00028619796
    %v140 = vmul.f32 %v137, %v139
    %v141 = vadd.f32 %v140, 0.0036580483
    %v142 = vmul.f32 %v137, %v141
    %v143 = vadd.f32 %v142, 0.05243302
    %v144 = vmul.f32 %v137, %v143
    %v145 = vadd.f32 %v144, 0.18741608
    %v146 = vmul.f32 %v137, %v145
    %v147 = vadd.f32 %v146, 1.1283791
    %v148 = vmul.f32 %v95, %v147
    %v149 = vmul.f32 %v137, 3.8918573e-05
    %v150 = vadd.f32 %v149, 0.001143296
    %v151 = vmul.f32 %v137, %v150
    %v152 = vadd.f32 %v151, 0.014752088
    %v153 = vmul.f32 %v137, %v152
    %v154 = vadd.f32 %v153, 0.112945676
    %v155 = vmul.f32 %v137, %v154
    %v156 = vadd.f32 %v155, 0.4994258
    %v157 = vmul.f32 %v137, %v156
    %v158 = vadd.f32 %v157, 1.0
    %v159 = vrcp.pop %v158
    %v160 = vmul.f32 %v158, %v159
    %v161 = vsub.f32 1.0, %v160
    %v162 = vmul.f32 %v159, %v161
    %v163 = vadd.f32 %v159, %v162
    %vm164 = vweird.f32 %v158
    %vm165 = vweird.f32 %v159
    %vm166 = vmor %vm164, %vm165
    %v167 = vsel %vm166, %v159, %v163
    %v168 = vand.u32 2147483647, %v158
    %vm169 = vcmp.eq.f32.partialorder %v168, 8.507059e+37
    %v170 = vand.u32 %v158, 2147483648
    %v171 = vor.u32 1.1754944e-38, %v170
    %v172 = vsel %vm169, %v171, %v167
    %v173 = vmul.f32 %v148, %v172
    %v174 = vmin.f32 %v173, 1.0
    %v175 = vmax.f32 %v174, -1.0
    %v176 = vadd.f32 %v135, 1.0
    %v177 = vadd.f32 %v175, 1.0
    %v178 = vmul.f32 %v92, %v176
    %v179 = vmul.f32 %v93, %v177
    %180 = vst [vmem:[#allocation7] sm:$0xff] %v178
    %181 = vst [vmem:[#allocation7 + $0x8] sm:$0xff] %v179
    // Predicated region
    $region22: #{tpu_custom_call.1} parent=1 // pred_check
      _
    $region23: #{tpu_custom_call.1} parent=1 // pred_check_branch
      %183 = sbr.rel (0) target = $region25
    $region24: #{tpu_custom_call.1} parent=1 // pred_region
      %185 = vsyncadd [#allocation4], 0
      %s186 = sshll.u32 [#allocation7], 4
      %s187 = int_to_ptr.vmem [resolvable:$true] %s186
      %s188 = sshll.u32 %s3, 4
      %s189 = int_to_ptr.hbm [resolvable:$true] %s188
      %194 = dma.vmem_to_hbm [thread:$0]  %s187, 256, %s189, [#allocation4], 128, 128, 8
    $region25: #{tpu_custom_call.1} parent=1 // pred_fallthru
      _
    // Predicated region
    $region26: #{tpu_custom_call.1} parent=1 // pred_check
      _
    $region27: #{tpu_custom_call.1} parent=1 // pred_check_branch
      %196 = sbr.rel (0) target = $region29
    $region28: #{tpu_custom_call.1} parent=1 // pred_region
      %198 = dma.done [#allocation4], 256
    $region29: #{tpu_custom_call.1} parent=1 // pred_fallthru
      _
    %199 = vsyncpa [#allocation3], 1
    %200 = vsyncpa [#allocation6], 1
    %201 = vsyncpa [#allocation4], 1

</llo_original>
